<compile_context>
chip_gen: v7x
topology: tpu7x:2x2x1
jax: 0.10.0
libtpu: 0.0.40
codegen_flags: <defaults>
</compile_context>

<pallas_src>
import jax
import jax.numpy as jnp
from jax.experimental import pallas as pl
from jax.experimental.pallas import tpu as pltpu


def _round_up(n, m):
    return ((n + m - 1) // m) * m


def _cdiv(a, b):
    return -(-a // b)


def cartnn_kernel(xT_ref, w1_ref, b1_ref, w2_ref, b2_ref, w3_ref, b3_ref, oT_ref):
    """One batch tile (batch on lanes): xT_ref [Kp, TB] -> oT_ref [1, TB]."""
    xT = xT_ref[...]                                   # [Kp, TB] lane-dense load

    # ---- Layer 1: K = d_in padded to 8 -> aligned MXU matmul, f32 acc. ----
    h1 = jnp.tanh(
        jnp.dot(w1_ref[...], xT, preferred_element_type=jnp.float32)
        + b1_ref[...]                                  # [H1,1] broadcasts on lanes
    )                                                  # [H1, TB]

    # ---- Layer 2: H1 x H2 dense -> MXU. ----
    h2 = jnp.tanh(
        jnp.dot(w2_ref[...], h1, preferred_element_type=jnp.float32)
        + b2_ref[...]
    )                                                  # [H2, TB]

    # ---- Layer 3: out_features = 1 -> multiply + sublane reduce (VPU/XLU),
    # hidden under the EUP (tanh) work; b3 is an SMEM scalar. ----
    out = jnp.sum(w3_ref[...] * h2, axis=0, keepdims=True) + b3_ref[0, 0]
    oT_ref[...] = out.astype(oT_ref.dtype)             # [1, TB] lane-dense store


def cartnn_forward(x, params, *, batch_tile=16384):
    """x: [B, D_in] f32. params: [(W1,b1),(W2,b2),(W3,b3)] in PyTorch layout
    (W: [out, in], b: [out]). Returns [B, 1] f32, matching CartNN.forward."""
    (w1, b1), (w2, b2), (w3, b3) = params
    x = x.astype(jnp.float32)
    B, d_in = x.shape
    h1d, h2d = w1.shape[0], w2.shape[0]
    out_dim = w3.shape[0]  # = 1

    # Feature dim padded up to a sublane multiple so the layer-1 matmul's
    # contraction dim is (8)-aligned; zero columns contribute nothing.
    kp = _round_up(d_in, 8)
    w1p = jnp.pad(w1.astype(jnp.float32), ((0, 0), (0, kp - d_in)))

    # ---- Batch tiling: big tiles, >=2 grid steps when possible, minimal pad. ----
    b_pad = _round_up(max(B, 1), 128)                  # pad only to 128 lanes
    tb = min(_round_up(max(batch_tile, 128), 128), b_pad)
    n_tiles = _cdiv(b_pad, tb)
    if n_tiles == 1 and b_pad >= 256:
        n_tiles = 2                                    # keep both v7x TCs busy
    if n_tiles > 1:
        tb = _round_up(_cdiv(b_pad, n_tiles), 128)     # balanced, 128-aligned tiles
        n_tiles = _cdiv(b_pad, tb)
        b_pad = n_tiles * tb

    # Single fused relayout pass over x: transpose + feature/batch pad done as
    # one scatter into a zero buffer (see TODO in header about eliminating it).
    xT = jnp.zeros((kp, b_pad), jnp.float32).at[:d_in, :B].set(x.T)

    # Column-shaped biases / w3 so they broadcast along lanes; b3 as SMEM scalar.
    b1c = b1.reshape(h1d, 1).astype(jnp.float32)
    b2c = b2.reshape(h2d, 1).astype(jnp.float32)
    w3c = w3.reshape(h2d, 1).astype(jnp.float32)       # [1,H2] -> [H2,1]
    b3s = b3.reshape(1, 1).astype(jnp.float32)

    const = lambda shape: pl.BlockSpec(shape, lambda i: (0, 0))

    outT = pl.pallas_call(
        cartnn_kernel,
        out_shape=jax.ShapeDtypeStruct((out_dim, b_pad), jnp.float32),
        grid=(n_tiles,),
        in_specs=[
            pl.BlockSpec((kp, tb), lambda i: (0, i)),  # x^T batch tile (lane-dense)
            const((h1d, kp)),                          # W1 (VMEM-resident)
            const((h1d, 1)),                           # b1
            const((h2d, h1d)),                         # W2
            const((h2d, 1)),                           # b2
            const((h2d, 1)),                           # w3 column
            pl.BlockSpec(memory_space=pltpu.MemorySpace.SMEM),  # b3 scalar
        ],
        out_specs=pl.BlockSpec((out_dim, tb), lambda i: (0, i)),
        compiler_params=pltpu.CompilerParams(
            dimension_semantics=("parallel",),
            vmem_limit_bytes=32 * 1024 * 1024,
        ),
    )(xT, w1p, b1c, w2, b2c, w3c, b3s)

    return outT[:, :B].T                               # [B, 1]


def make_params(key, layer_sizes):
    """PyTorch-layout params mirroring CartNN(layer_sizes=...): W [out,in], b [out]."""
    dims = list(layer_sizes) + [1]
    params = []
    for i in range(len(dims) - 1):
        d_in, d_out = dims[i], dims[i + 1]
        key, kw, kb = jax.random.split(key, 3)
        bound = 1.0 / jnp.sqrt(d_in)                   # nn.Linear default init range
        w = jax.random.uniform(kw, (d_out, d_in), jnp.float32, -bound, bound)
        b = jax.random.uniform(kb, (d_out,), jnp.float32, -bound, bound)
        params.append((w, b))
    return params


def reference_forward(x, params):
    h = x
    n = len(params)
    for i, (w, b) in enumerate(params):
        h = h @ w.T + b
        if i < n - 1:
            h = jnp.tanh(h)
    return h


if __name__ == "__main__":
    key = jax.random.PRNGKey(0)
    k_x, k_x2, k_x3, k_p = jax.random.split(key, 4)

    # Cart-pole style state: 4 features, two hidden layers of 32, scalar output.
    layer_sizes = [4, 32, 32]
    params = make_params(k_p, layer_sizes)

    # Small batch (single 128-lane tile, exercises batch pad 8 -> 128 and the
    # feature pad 4 -> 8).
    x_small = jax.random.normal(k_x, (8, layer_sizes[0]), jnp.float32)
    out_small = jax.block_until_ready(cartnn_forward(x_small, params))
    ref_small = reference_forward(x_small, params)
    assert out_small.shape == (8, 1), out_small.shape
    assert jnp.allclose(out_small, ref_small, atol=1e-5, rtol=1e-5), (
        f"max abs err {jnp.max(jnp.abs(out_small - ref_small))}"
    )

    # Non-aligned batch: exercises the forced >=2-tile split (v7x megacore path)
    # plus the ragged-lane padding.
    x_big = jax.random.normal(k_x2, (600, layer_sizes[0]), jnp.float32)
    out_big = jax.block_until_ready(cartnn_forward(x_big, params))
    ref_big = reference_forward(x_big, params)
    assert out_big.shape == (600, 1), out_big.shape
    assert jnp.allclose(out_big, ref_big, atol=1e-5, rtol=1e-5), (
        f"max abs err {jnp.max(jnp.abs(out_big - ref_big))}"
    )

    # Multi-tile grid (explicit small batch_tile to exercise >2 grid steps).
    x_many = jax.random.normal(k_x3, (5000, layer_sizes[0]), jnp.float32)
    out_many = jax.block_until_ready(cartnn_forward(x_many, params, batch_tile=1024))
    ref_many = reference_forward(x_many, params)
    assert out_many.shape == (5000, 1), out_many.shape
    assert jnp.allclose(out_many, ref_many, atol=1e-5, rtol=1e-5), (
        f"max abs err {jnp.max(jnp.abs(out_many - ref_many))}"
    )

    print("KERNEL_OK")
</pallas_src>

<mosaic_0001>
module attributes {stable_mosaic.version = 11 : i64} {
  func.func @cartnn_kernel(%arg0: i32, %arg1: memref<8x128xf32, #tpu.memory_space<vmem>>, %arg2: memref<32x8xf32, #tpu.memory_space<vmem>>, %arg3: memref<32x1xf32, #tpu.memory_space<vmem>>, %arg4: memref<32x32xf32, #tpu.memory_space<vmem>>, %arg5: memref<32x1xf32, #tpu.memory_space<vmem>>, %arg6: memref<32x1xf32, #tpu.memory_space<vmem>>, %arg7: memref<1x1xf32, #tpu.memory_space<smem>>, %arg8: memref<1x128xf32, #tpu.memory_space<vmem>>) attributes {dimension_semantics = [#tpu.dimension_semantics<parallel>], iteration_bounds = array<i64: 1>, scalar_prefetch = 0 : i64, scratch_operands = 0 : i64, tpu.core_type = #tpu.core_type<tc>, window_params = [{transform_indices = @transform_0, window_bounds = array<i64: 8, 128>}, {pipeline_mode = #tpu.pipeline_mode<synchronous>, transform_indices = @transform_1, window_bounds = array<i64: 32, 8>}, {pipeline_mode = #tpu.pipeline_mode<synchronous>, transform_indices = @transform_2, window_bounds = array<i64: 32, 1>}, {pipeline_mode = #tpu.pipeline_mode<synchronous>, transform_indices = @transform_3, window_bounds = array<i64: 32, 32>}, {pipeline_mode = #tpu.pipeline_mode<synchronous>, transform_indices = @transform_4, window_bounds = array<i64: 32, 1>}, {pipeline_mode = #tpu.pipeline_mode<synchronous>, transform_indices = @transform_5, window_bounds = array<i64: 32, 1>}, {transform_indices = @transform_6, window_bounds = array<i64: 1, 1>}, {transform_indices = @transform_7, window_bounds = array<i64: 1, 128>}]} {
    %c0 = arith.constant 0 : index
    %c0_0 = arith.constant 0 : index
    %0 = vector.load %arg1[%c0, %c0_0] : memref<8x128xf32, #tpu.memory_space<vmem>>, vector<8x128xf32>
    %c0_1 = arith.constant 0 : index
    %c0_2 = arith.constant 0 : index
    %1 = vector.load %arg2[%c0_1, %c0_2] : memref<32x8xf32, #tpu.memory_space<vmem>>, vector<32x8xf32>
    %cst = arith.constant dense<0.000000e+00> : vector<32x128xf32>
    %2 = tpu.matmul %1, %0, %cst {dimension_numbers = #tpu.dot_dimension_numbers<[1], [0], [0], [1], [0, 0, 1, 1], [], []>} : vector<32x8xf32>, vector<8x128xf32>, vector<32x128xf32> -> vector<32x128xf32>
    %c0_3 = arith.constant 0 : index
    %c0_4 = arith.constant 0 : index
    %3 = vector.load %arg3[%c0_3, %c0_4] : memref<32x1xf32, #tpu.memory_space<vmem>>, vector<32x1xf32>
    %4 = vector.broadcast %3 : vector<32x1xf32> to vector<32x128xf32>
    %5 = arith.addf %2, %4 : vector<32x128xf32>
    %6 = math.tanh %5 : vector<32x128xf32>
    %c0_5 = arith.constant 0 : index
    %c0_6 = arith.constant 0 : index
    %7 = vector.load %arg4[%c0_5, %c0_6] : memref<32x32xf32, #tpu.memory_space<vmem>>, vector<32x32xf32>
    %cst_7 = arith.constant dense<0.000000e+00> : vector<32x128xf32>
    %8 = tpu.matmul %7, %6, %cst_7 {dimension_numbers = #tpu.dot_dimension_numbers<[1], [0], [0], [1], [0, 0, 1, 1], [], []>} : vector<32x32xf32>, vector<32x128xf32>, vector<32x128xf32> -> vector<32x128xf32>
    %c0_8 = arith.constant 0 : index
    %c0_9 = arith.constant 0 : index
    %9 = vector.load %arg5[%c0_8, %c0_9] : memref<32x1xf32, #tpu.memory_space<vmem>>, vector<32x1xf32>
    %10 = vector.broadcast %9 : vector<32x1xf32> to vector<32x128xf32>
    %11 = arith.addf %8, %10 : vector<32x128xf32>
    %12 = math.tanh %11 : vector<32x128xf32>
    %c0_10 = arith.constant 0 : index
    %c0_11 = arith.constant 0 : index
    %13 = vector.load %arg6[%c0_10, %c0_11] : memref<32x1xf32, #tpu.memory_space<vmem>>, vector<32x1xf32>
    %14 = vector.broadcast %13 : vector<32x1xf32> to vector<32x128xf32>
    %15 = arith.mulf %14, %12 : vector<32x128xf32>
    %cst_12 = arith.constant dense<0.000000e+00> : vector<128xf32>
    %16 = vector.multi_reduction <add>, %15, %cst_12 [0] : vector<32x128xf32> to vector<128xf32>
    %17 = vector.shape_cast %16 : vector<128xf32> to vector<1x128xf32>
    %c0_13 = arith.constant 0 : index
    %c0_14 = arith.constant 0 : index
    %18 = memref.load %arg7[%c0_13, %c0_14] : memref<1x1xf32, #tpu.memory_space<smem>>
    %19 = vector.broadcast %18 : f32 to vector<1x128xf32>
    %20 = arith.addf %17, %19 : vector<1x128xf32>
    %c0_15 = arith.constant 0 : index
    %c0_16 = arith.constant 0 : index
    %21 = vector.load %arg8[%c0_15, %c0_16] : memref<1x128xf32, #tpu.memory_space<vmem>>, vector<1x128xf32>
    tpu.vector_store %arg8[%c0_15, %c0_16], %20 {strides = array<i32>} : memref<1x128xf32, #tpu.memory_space<vmem>>, vector<1x128xf32>,
    return
  }
  func.func @transform_0(%arg0: i32) -> (i32, i32) {
    %c0_i32 = arith.constant 0 : i32
    %c0_i32_0 = arith.constant 0 : i32
    return %c0_i32, %arg0 : i32, i32
  }
  func.func @transform_1(%arg0: i32) -> (i32, i32) {
    %c0_i32 = arith.constant 0 : i32
    %c0_i32_0 = arith.constant 0 : i32
    %c0_i32_1 = arith.constant 0 : i32
    return %c0_i32, %c0_i32_0 : i32, i32
  }
  func.func @transform_2(%arg0: i32) -> (i32, i32) {
    %c0_i32 = arith.constant 0 : i32
    %c0_i32_0 = arith.constant 0 : i32
    %c0_i32_1 = arith.constant 0 : i32
    return %c0_i32, %c0_i32_0 : i32, i32
  }
  func.func @transform_3(%arg0: i32) -> (i32, i32) {
    %c0_i32 = arith.constant 0 : i32
    %c0_i32_0 = arith.constant 0 : i32
    %c0_i32_1 = arith.constant 0 : i32
    return %c0_i32, %c0_i32_0 : i32, i32
  }
  func.func @transform_4(%arg0: i32) -> (i32, i32) {
    %c0_i32 = arith.constant 0 : i32
    %c0_i32_0 = arith.constant 0 : i32
    %c0_i32_1 = arith.constant 0 : i32
    return %c0_i32, %c0_i32_0 : i32, i32
  }
  func.func @transform_5(%arg0: i32) -> (i32, i32) {
    %c0_i32 = arith.constant 0 : i32
    %c0_i32_0 = arith.constant 0 : i32
    %c0_i32_1 = arith.constant 0 : i32
    return %c0_i32, %c0_i32_0 : i32, i32
  }
  func.func @transform_6(%arg0: i32) -> (i32, i32) {
    %c0_i32 = arith.constant 0 : i32
    %c0_i32_0 = arith.constant 0 : i32
    %c0_i32_1 = arith.constant 0 : i32
    return %c0_i32, %c0_i32_0 : i32, i32
  }
  func.func @transform_7(%arg0: i32) -> (i32, i32) {
    %c0_i32 = arith.constant 0 : i32
    %c0_i32_0 = arith.constant 0 : i32
    return %c0_i32, %arg0 : i32, i32
  }
}

</mosaic_0001>

<llo_original>
// kernel: tpu_custom_call.1
$region0: #{tpu_custom_call.1}
  #allocation0 [shape = 'u32[]', space=smem, size = 0x4, offset = 0x4, fixed_abs, tag = 'smem constant byte address 0x4 - core index']
  #allocation1 [shape = 'u32[144,128]{1,0:T(1,128)}', space=vmem, size = 0x12000, scoped, tag = 'internal scratch']
  #allocation2 [shape = 'f32[1,1]{1,0:T(1,128)S(6)}', space=smem, size = 0x200, scoped, tag = 'scoped memory for tpu_custom_call.1']
  %s0 = inlined_call_operand.vmem [shape: f32[8,128], index: 0, kind: input, shape index: {}]
  %s1 = inlined_call_operand.vmem [shape: f32[32,8], index: 1, kind: input, shape index: {}]
  %s2 = inlined_call_operand.vmem [shape: f32[32,1], index: 2, kind: input, shape index: {}]
  %s3 = inlined_call_operand.vmem [shape: f32[32,32], index: 3, kind: input, shape index: {}]
  %s4 = inlined_call_operand.vmem [shape: f32[32,1], index: 4, kind: input, shape index: {}]
  %s5 = inlined_call_operand.vmem [shape: f32[32,1], index: 5, kind: input, shape index: {}]
  %s6 = inlined_call_operand.<no memory space> [shape: f32[1,1], index: 6, kind: input, shape index: {}]
  %s7 = inlined_call_operand.hbm [shape: f32[1,128], index: 7, kind: output, shape index: {}]
  %s8 = sld [smem:[#allocation0]]
  $region38: #{tpu_custom_call.1} parent=0
    _
  %s10 = ssub.s32 1, %s8
  %s11 = scalar_select 0, %s10, %s8
  %12 = sst [smem:[#allocation2]] %s6
  $region1: #{tpu_custom_call.1} parent=0
    #allocation3 [shape = 'u8[512]{0}', space=vmem, size = 0x400, scoped, tag = 'output window, operand 0, single buffered']
    #allocation4 [shape = 's32[1]{0}', space=sflag, size = 0x4, scoped, tag = 'scoped memory for tpu_custom_call.1']
    %13 = vsyncpa [#allocation4], 0
    // Predicated region
    $region2: #{tpu_custom_call.1} parent=1 // pred_check
      _
    $region3: #{tpu_custom_call.1} parent=1 // pred_check_branch
      %15 = sbr.rel (0) target = $region5
    $region4: #{tpu_custom_call.1} parent=1 // pred_region
      _
    $region5: #{tpu_custom_call.1} parent=1 // pred_fallthru
      _
    // Predicated region
    $region6: #{tpu_custom_call.1} parent=1 // pred_check
      _
    $region7: #{tpu_custom_call.1} parent=1 // pred_check_branch
      %17 = sbr.rel (0) target = $region9
    $region8: #{tpu_custom_call.1} parent=1 // pred_region
      _
    $region9: #{tpu_custom_call.1} parent=1 // pred_fallthru
      _
    // Predicated region
    $region10: #{tpu_custom_call.1} parent=1 // pred_check
      _
    $region11: #{tpu_custom_call.1} parent=1 // pred_check_branch
      %19 = sbr.rel (0) target = $region13
    $region12: #{tpu_custom_call.1} parent=1 // pred_region
      _
    $region13: #{tpu_custom_call.1} parent=1 // pred_fallthru
      _
    // Predicated region
    $region14: #{tpu_custom_call.1} parent=1 // pred_check
      _
    $region15: #{tpu_custom_call.1} parent=1 // pred_check_branch
      %21 = sbr.rel (0) target = $region17
    $region16: #{tpu_custom_call.1} parent=1 // pred_region
      _
    $region17: #{tpu_custom_call.1} parent=1 // pred_fallthru
      _
    // Predicated region
    $region18: #{tpu_custom_call.1} parent=1 // pred_check
      _
    $region19: #{tpu_custom_call.1} parent=1 // pred_check_branch
      %23 = sbr.rel (0) target = $region21
    $region20: #{tpu_custom_call.1} parent=1 // pred_region
      _
    $region21: #{tpu_custom_call.1} parent=1 // pred_fallthru
      _
    // Predicated region
    $region22: #{tpu_custom_call.1} parent=1 // pred_check
      _
    $region23: #{tpu_custom_call.1} parent=1 // pred_check_branch
      %25 = sbr.rel (0) target = $region25
    $region24: #{tpu_custom_call.1} parent=1 // pred_region
      _
    $region25: #{tpu_custom_call.1} parent=1 // pred_fallthru
      _
    // Predicated region
    $region26: #{tpu_custom_call.1} parent=1 // pred_check
      _
    $region27: #{tpu_custom_call.1} parent=1 // pred_check_branch
      %27 = sbr.rel (0) target = $region29
    $region28: #{tpu_custom_call.1} parent=1 // pred_region
      _
    $region29: #{tpu_custom_call.1} parent=1 // pred_fallthru
      _
    %v28 = vld [vmem:[%s0] sm:$0xff]
    %v29 = vld [vmem:[%s1] sm:$0xff]
    %v30 = vld [vmem:[%s1 + $0x8] sm:$0xff]
    %v31 = vld [vmem:[%s1 + $0x10] sm:$0xff]
    %v32 = vld [vmem:[%s1 + $0x18] sm:$0xff]
    %v33 = vld [vmem:[%s2] sm:$0xff]
    %v34 = vld [vmem:[%s2 + $0x8] sm:$0xff]
    %v35 = vld [vmem:[%s2 + $0x10] sm:$0xff]
    %v36 = vld [vmem:[%s2 + $0x18] sm:$0xff]
    %38 = vset.pattern.permute.xlu0 0
    %39 = vperm.xlu0 %38, %v33
    %v40 = vpop.permute.xlu0 %39
    %43 = vset.pattern.permute.xlu0 0
    %44 = vperm.xlu0 %43, %v34
    %v45 = vpop.permute.xlu0 %44
    %48 = vset.pattern.permute.xlu0 0
    %49 = vperm.xlu0 %48, %v35
    %v50 = vpop.permute.xlu0 %49
    %53 = vset.pattern.permute.xlu0 0
    %54 = vperm.xlu0 %53, %v36
    %v55 = vpop.permute.xlu0 %54
    %vm57 = vcmask 64512
    %v59 = vsel %vm57, %v29, 0
    %v62 = vsel %vm57, %v30, 0
    %v65 = vsel %vm57, %v31, 0
    %v68 = vsel %vm57, %v32, 0
    %70 = vmatprep.subr.mxu0 0.0
    %71 = vmatpush1.msra.mxu0 %v28
    %72 = vmatprep.subr.mxu0 0.0
    %73 = vmatpush1.msra.mxu0 0.0
    %74 = vmatprep.subr.mxu0 0.0
    %75 = vmatpush1.msra.mxu0 0.0
    %76 = vmatprep.subr.mxu0 0.0
    %77 = vmatpush1.msra.mxu0 0.0
    %78 = vmatprep.subr.mxu0 0.0
    %79 = vmatpush1.msra.mxu0 0.0
    %80 = vmatprep.subr.mxu0 0.0
    %81 = vmatpush1.msra.mxu0 0.0
    %82 = vmatprep.subr.mxu0 0.0
    %83 = vmatpush1.msra.mxu0 0.0
    %84 = vmatprep.subr.mxu0 0.0
    %85 = vmatpush1.msra.mxu0 0.0
    %86 = vmatprep.subr.mxu0 0.0
    %87 = vmatpush1.msra.mxu0 0.0
    %88 = vmatprep.subr.mxu0 0.0
    %89 = vmatpush1.msra.mxu0 0.0
    %90 = vmatprep.subr.mxu0 0.0
    %91 = vmatpush1.msra.mxu0 0.0
    %92 = vmatprep.subr.mxu0 0.0
    %93 = vmatpush1.msra.mxu0 0.0
    %94 = vmatprep.subr.mxu0 0.0
    %95 = vmatpush1.msra.mxu0 0.0
    %96 = vmatprep.subr.mxu0 0.0
    %97 = vmatpush1.msra.mxu0 0.0
    %98 = vmatprep.subr.mxu0 0.0
    %99 = vmatpush1.msra.mxu0 0.0
    %100 = vmatprep.subr.mxu0 0.0
    %101 = vmatpush1.msra.mxu0 0.0
    %102 = vmatprep.subr.mxu0 0.0
    %103 = vmatpush1.msra.mxu0 0.0
    %104 = vmatprep.subr.mxu0 0.0
    %105 = vmatpush1.msra.mxu0 0.0
    %106 = vmatprep.subr.mxu0 0.0
    %107 = vmatpush1.msra.mxu0 0.0
    %108 = vmatprep.subr.mxu0 0.0
    %109 = vmatpush1.msra.mxu0 0.0
    %110 = vmatprep.subr.mxu0 0.0
    %111 = vmatpush1.msra.mxu0 0.0
    %112 = vmatprep.subr.mxu0 0.0
    %113 = vmatpush1.msra.mxu0 0.0
    %114 = vmatprep.subr.mxu0 0.0
    %115 = vmatpush1.msra.mxu0 0.0
    %116 = vmatprep.subr.mxu0 0.0
    %117 = vmatpush1.msra.mxu0 0.0
    %118 = vmatprep.subr.mxu0 0.0
    %119 = vmatpush1.msra.mxu0 0.0
    %120 = vmatprep.subr.mxu0 0.0
    %121 = vmatpush1.msra.mxu0 0.0
    %122 = vmatprep.subr.mxu0 0.0
    %123 = vmatpush1.msra.mxu0 0.0
    %124 = vmatprep.subr.mxu0 0.0
    %125 = vmatpush1.msra.mxu0 0.0
    %126 = vmatprep.subr.mxu0 0.0
    %127 = vmatpush1.msra.mxu0 0.0
    %128 = vmatprep.subr.mxu0 0.0
    %129 = vmatpush1.msra.mxu0 0.0
    %130 = vmatprep.subr.mxu0 0.0
    %131 = vmatpush1.msra.mxu0 0.0
    %132 = vmatprep.subr.mxu0 0.0
    %133 = vmatpush1.msra.mxu0 0.0
    %134 = vmatprep.mubr.f32.mxu0 0.0
    %135 = vmatmul.mubr.f32.gmra.mrb[0].mxu0 %v59
    %v136 = vpop.f32.mrb[0].mxu0
    %v137 = vadd.f32 %v40, %v136
    %v138 = vpop.f32.mrb[0].mxu0
    %139 = vmatprep.mubr.f32.mxu0 0.0
    %140 = vmatmul.mubr.f32.gmra.mrb[0].mxu0 %v62
    %v141 = vpop.f32.mrb[0].mxu0
    %v142 = vadd.f32 %v45, %v141
    %v143 = vpop.f32.mrb[0].mxu0
    %144 = vmatprep.mubr.f32.mxu0 0.0
    %145 = vmatmul.mubr.f32.gmra.mrb[0].mxu0 %v65
    %v146 = vpop.f32.mrb[0].mxu0
    %v147 = vadd.f32 %v50, %v146
    %v148 = vpop.f32.mrb[0].mxu0
    %149 = vmatprep.mubr.f32.mxu0 0.0
    %150 = vmatmul.mubr.f32.gmra.mrb[0].mxu0 %v68
    %v151 = vpop.f32.mrb[0].mxu0
    %v152 = vadd.f32 %v55, %v151
    %v153 = vpop.f32.mrb[0].mxu0
    %154 = vdwg.mxu0
    %v155 = vtanh.pop %v137
    %v156 = vtanh.pop %v142
    %v157 = vtanh.pop %v147
    %v158 = vtanh.pop %v152
    %v159 = vld [vmem:[%s3] sm:$0xff]
    %v160 = vld [vmem:[%s3 + $0x8] sm:$0xff]
    %v161 = vld [vmem:[%s3 + $0x10] sm:$0xff]
    %v162 = vld [vmem:[%s3 + $0x18] sm:$0xff]
    %v163 = vld [vmem:[%s4] sm:$0xff]
    %v164 = vld [vmem:[%s4 + $0x8] sm:$0xff]
    %v165 = vld [vmem:[%s4 + $0x10] sm:$0xff]
    %v166 = vld [vmem:[%s4 + $0x18] sm:$0xff]
    %168 = vset.pattern.permute.xlu0 0
    %169 = vperm.xlu0 %168, %v163
    %v170 = vpop.permute.xlu0 %169
    %173 = vset.pattern.permute.xlu0 0
    %174 = vperm.xlu0 %173, %v164
    %v175 = vpop.permute.xlu0 %174
    %178 = vset.pattern.permute.xlu0 0
    %179 = vperm.xlu0 %178, %v165
    %v180 = vpop.permute.xlu0 %179
    %183 = vset.pattern.permute.xlu0 0
    %184 = vperm.xlu0 %183, %v166
    %v185 = vpop.permute.xlu0 %184
    %vm187 = vcmask 261120
    %v189 = vsel %vm187, %v159, 0
    %v192 = vsel %vm187, %v160, 0
    %v195 = vsel %vm187, %v161, 0
    %v198 = vsel %vm187, %v162, 0
    %200 = vmatprep.subr.mxu0 0.0
    %201 = vmatpush1.msra.mxu0 %v155
    %202 = vmatprep.subr.mxu0 0.0
    %203 = vmatpush1.msra.mxu0 %v156
    %204 = vmatprep.subr.mxu0 0.0
    %205 = vmatpush1.msra.mxu0 %v157
    %206 = vmatprep.subr.mxu0 0.0
    %207 = vmatpush1.msra.mxu0 %v158
    %208 = vmatprep.subr.mxu0 0.0
    %209 = vmatpush1.msra.mxu0 0.0
    %210 = vmatprep.subr.mxu0 0.0
    %211 = vmatpush1.msra.mxu0 0.0
    %212 = vmatprep.subr.mxu0 0.0
    %213 = vmatpush1.msra.mxu0 0.0
    %214 = vmatprep.subr.mxu0 0.0
    %215 = vmatpush1.msra.mxu0 0.0
    %216 = vmatprep.subr.mxu0 0.0
    %217 = vmatpush1.msra.mxu0 0.0
    %218 = vmatprep.subr.mxu0 0.0
    %219 = vmatpush1.msra.mxu0 0.0
    %220 = vmatprep.subr.mxu0 0.0
    %221 = vmatpush1.msra.mxu0 0.0
    %222 = vmatprep.subr.mxu0 0.0
    %223 = vmatpush1.msra.mxu0 0.0
    %224 = vmatprep.subr.mxu0 0.0
    %225 = vmatpush1.msra.mxu0 0.0
    %226 = vmatprep.subr.mxu0 0.0
    %227 = vmatpush1.msra.mxu0 0.0
    %228 = vmatprep.subr.mxu0 0.0
    %229 = vmatpush1.msra.mxu0 0.0
    %230 = vmatprep.subr.mxu0 0.0
    %231 = vmatpush1.msra.mxu0 0.0
    %232 = vmatprep.subr.mxu0 0.0
    %233 = vmatpush1.msra.mxu0 0.0
    %234 = vmatprep.subr.mxu0 0.0
    %235 = vmatpush1.msra.mxu0 0.0
    %236 = vmatprep.subr.mxu0 0.0
    %237 = vmatpush1.msra.mxu0 0.0
    %238 = vmatprep.subr.mxu0 0.0
    %239 = vmatpush1.msra.mxu0 0.0
    %240 = vmatprep.subr.mxu0 0.0
    %241 = vmatpush1.msra.mxu0 0.0
    %242 = vmatprep.subr.mxu0 0.0
    %243 = vmatpush1.msra.mxu0 0.0
    %244 = vmatprep.subr.mxu0 0.0
    %245 = vmatpush1.msra.mxu0 0.0
    %246 = vmatprep.subr.mxu0 0.0
    %247 = vmatpush1.msra.mxu0 0.0
    %248 = vmatprep.subr.mxu0 0.0
    %249 = vmatpush1.msra.mxu0 0.0
    %250 = vmatprep.subr.mxu0 0.0
    %251 = vmatpush1.msra.mxu0 0.0
    %252 = vmatprep.subr.mxu0 0.0
    %253 = vmatpush1.msra.mxu0 0.0
    %254 = vmatprep.subr.mxu0 0.0
    %255 = vmatpush1.msra.mxu0 0.0
    %256 = vmatprep.subr.mxu0 0.0
    %257 = vmatpush1.msra.mxu0 0.0
    %258 = vmatprep.subr.mxu0 0.0
    %259 = vmatpush1.msra.mxu0 0.0
    %260 = vmatprep.subr.mxu0 0.0
    %261 = vmatpush1.msra.mxu0 0.0
    %262 = vmatprep.subr.mxu0 0.0
    %263 = vmatpush1.msra.mxu0 0.0
    %264 = vmatprep.mubr.f32.mxu0 0.0
    %265 = vmatmul.mubr.f32.gmra.mrb[0].mxu0 %v189
    %v266 = vpop.f32.mrb[0].mxu0
    %v267 = vadd.f32 %v170, %v266
    %v268 = vpop.f32.mrb[0].mxu0
    %269 = vmatprep.mubr.f32.mxu0 0.0
    %270 = vmatmul.mubr.f32.gmra.mrb[0].mxu0 %v192
    %v271 = vpop.f32.mrb[0].mxu0
    %v272 = vadd.f32 %v175, %v271
    %v273 = vpop.f32.mrb[0].mxu0
    %274 = vmatprep.mubr.f32.mxu0 0.0
    %275 = vmatmul.mubr.f32.gmra.mrb[0].mxu0 %v195
    %v276 = vpop.f32.mrb[0].mxu0
    %v277 = vadd.f32 %v180, %v276
    %v278 = vpop.f32.mrb[0].mxu0
    %279 = vmatprep.mubr.f32.mxu0 0.0
    %280 = vmatmul.mubr.f32.gmra.mrb[0].mxu0 %v198
    %v281 = vpop.f32.mrb[0].mxu0
    %v282 = vadd.f32 %v185, %v281
    %v283 = vpop.f32.mrb[0].mxu0
    %284 = vdwg.mxu0
    %v285 = vtanh.pop %v267
    %v286 = vtanh.pop %v272
    %v287 = vtanh.pop %v277
    %v288 = vtanh.pop %v282
    %v289 = vld [vmem:[%s5] sm:$0xff]
    %v290 = vld [vmem:[%s5 + $0x8] sm:$0xff]
    %v291 = vld [vmem:[%s5 + $0x10] sm:$0xff]
    %v292 = vld [vmem:[%s5 + $0x18] sm:$0xff]
    %294 = vset.pattern.permute.xlu0 0
    %295 = vperm.xlu0 %294, %v289
    %v296 = vpop.permute.xlu0 %295
    %299 = vset.pattern.permute.xlu0 0
    %300 = vperm.xlu0 %299, %v290
    %v301 = vpop.permute.xlu0 %300
    %304 = vset.pattern.permute.xlu0 0
    %305 = vperm.xlu0 %304, %v291
    %v306 = vpop.permute.xlu0 %305
    %309 = vset.pattern.permute.xlu0 0
    %310 = vperm.xlu0 %309, %v292
    %v311 = vpop.permute.xlu0 %310
    %v313 = vmul.f32 %v296, %v285
    %v314 = vmul.f32 %v301, %v286
    %v315 = vmul.f32 %v306, %v287
    %v316 = vmul.f32 %v311, %v288
    %v317 = vadd.f32 %v313, %v314
    %v318 = vadd.f32 %v317, %v315
    %v319 = vadd.f32 %v318, %v316
    %v320 = vrot.slane %v319, 4
    %v321 = vadd.f32 %v319, %v320
    %v322 = vrot.slane %v321, 2
    %v323 = vadd.f32 %v321, %v322
    %v324 = vrot.slane %v323, 1
    %v325 = vadd.f32 %v323, %v324
    %s326 = sld [smem:[#allocation2]]
    %v327 = vstv %s326
    %v328 = vadd.f32 %v325, %v327
    %329 = vst [vmem:[#allocation3] sm:$0x1] %v328
    // Predicated region
    $region30: #{tpu_custom_call.1} parent=1 // pred_check
      _
    $region31: #{tpu_custom_call.1} parent=1 // pred_check_branch
      %331 = sbr.rel (0) target = $region33
    $region32: #{tpu_custom_call.1} parent=1 // pred_region
      %s333 = ssub.s32 16, 16
      %334 = vsyncadd [#allocation4], %s333
      %s336 = sshll.u32 [#allocation3], 4
      %s337 = int_to_ptr.vmem [resolvable:$true] %s336
      %339 = dma.vmem_to_hbm [thread:$0]  %s337, 16, %s7, [#allocation4]
    $region33: #{tpu_custom_call.1} parent=1 // pred_fallthru
      _
    // Predicated region
    $region34: #{tpu_custom_call.1} parent=1 // pred_check
      _
    $region35: #{tpu_custom_call.1} parent=1 // pred_check_branch
      %341 = sbr.rel (0) target = $region37
    $region36: #{tpu_custom_call.1} parent=1 // pred_region
      %342 = dma.done [#allocation4], 16
    $region37: #{tpu_custom_call.1} parent=1 // pred_fallthru
      _
    %343 = vsyncpa [#allocation4], 1

</llo_original>
